<compile_context>
chip_gen: v6e
topology: v6e:2x2x1
jax: 0.10.0
libtpu: 0.0.40
codegen_flags: <defaults>
</compile_context>

<pallas_src>
import numpy as np
import jax
import jax.numpy as jnp
from jax import lax
from jax.experimental import pallas as pl
from jax.experimental.pallas import tpu as pltpu

NUM_QUBITS = 4                    # input_size == num encoding params == num qubits
NUM_LAYERS = 2                    # variational layers -> theta has L*Q entries
STATE_DIM = 2 ** NUM_QUBITS       # 16
TILE_B = 128                      # batch tile: lane-dense (multiple of 128)

# ---------------------------------------------------------------------------
# Static lookup tables for the pure-JAX reference only (the kernel generates
# bit patterns in-kernel from iota).
# ---------------------------------------------------------------------------
_idx = np.arange(STATE_DIM)
BITS = np.stack([((_idx >> q) & 1).astype(np.float32) for q in range(NUM_QUBITS)],
                axis=0)                            # (Q, D)
SIGN = (1.0 - 2.0 * BITS.T).astype(np.float32)     # (D, Q)


# ---------------------------------------------------------------------------
# Glue: build the (real) variational unitary U_var from theta (plain JAX).
# ---------------------------------------------------------------------------
def _ry(theta):
    c = jnp.cos(0.5 * theta)
    s = jnp.sin(0.5 * theta)
    return jnp.stack([jnp.stack([c, -s]), jnp.stack([s, c])]).astype(jnp.float32)


def _ry_layer_full(thetas):
    # little-endian: full = kron(R_{Q-1}, ..., R_1, R_0)
    u = _ry(thetas[NUM_QUBITS - 1])
    for q in range(NUM_QUBITS - 2, -1, -1):
        u = jnp.kron(u, _ry(thetas[q]))
    return u


def _cnot_full(control, target):
    p = np.zeros((STATE_DIM, STATE_DIM), dtype=np.float32)
    for j in range(STATE_DIM):
        i = j ^ (1 << target) if (j >> control) & 1 else j
        p[i, j] = 1.0
    return p


# ring entangler: CNOT(0,1) first, then CNOT(1,2), ... CNOT(Q-1,0)
_ENT = np.eye(STATE_DIM, dtype=np.float32)
for _q in range(NUM_QUBITS):
    _ENT = _cnot_full(_q, (_q + 1) % NUM_QUBITS) @ _ENT
_ENT = jnp.asarray(_ENT)


def build_variational_unitary(theta):
    """theta: (NUM_LAYERS * NUM_QUBITS,) -> real (D, D) unitary."""
    theta = theta.reshape(NUM_LAYERS, NUM_QUBITS)
    u = jnp.eye(STATE_DIM, dtype=jnp.float32)
    for l in range(NUM_LAYERS):
        u = _ENT @ (_ry_layer_full(theta[l]) @ u)
    return u


# ---------------------------------------------------------------------------
# Pallas kernel: encode -> evolve -> measure, batch on the lane axis.
#   x_ref  : (Q, TILE_B)   encoding angles (transposed)
#   u_ref  : (D, D)        variational unitary (VMEM-resident across steps)
#   out_ref: (Q, TILE_B)   <Z_q> per sample (transposed)
# ---------------------------------------------------------------------------
def qnn_kernel(x_ref, u_ref, out_ref):
    x = x_ref[...]                                   # (Q, TB) lane-dense
    c = jnp.cos(0.5 * x)                             # exactly 2*Q transcendentals
    s = jnp.sin(0.5 * x)                             # per sample, f32

    # basis index per sublane of the statevector, generated in-kernel
    basis = lax.broadcasted_iota(jnp.int32, (STATE_DIM, 1), 0)   # (D, 1)

    # Product-state amplitudes: psi[i, b] = prod_q (bit_q(i) ? sin : cos)
    bit0 = (basis >> 0) & 1
    psi = jnp.where(bit0 == 1, s[0:1, :], c[0:1, :])             # (D, TB)
    for q in range(1, NUM_QUBITS):                               # static unroll
        bit = (basis >> q) & 1
        psi = psi * jnp.where(bit == 1, s[q:q + 1, :], c[q:q + 1, :])

    # Apply variational unitary: psi <- U @ psi   (D,D) @ (D,TB)
    psi = jnp.dot(u_ref[...], psi, preferred_element_type=jnp.float32)

    # Pauli-Z expectations as Q sign-weighted cross-sublane reductions (VPU/XLU)
    probs = psi * psi                                            # (D, TB)
    rows = []
    for q in range(NUM_QUBITS):
        sgn = (1.0 - 2.0 * ((basis >> q) & 1)).astype(jnp.float32)   # (D, 1)
        rows.append(jnp.sum(sgn * probs, axis=0, keepdims=True))     # (1, TB)
    out_ref[...] = jnp.concatenate(rows, axis=0)                     # (Q, TB)


def quantum_module_forward(x, theta, tile_b=TILE_B):
    """x: (B, Q) f32 inputs; theta: (L*Q,) f32 variational params -> (B, Q) f32."""
    x = x.astype(jnp.float32)
    b = x.shape[0]
    u = build_variational_unitary(theta)             # (D, D); kernel does U @ psi

    # Pad batch up to a multiple of tile_b so no rows are left unwritten.
    b_pad = ((b + tile_b - 1) // tile_b) * tile_b
    xt = x.T                                         # (Q, B) -- batch on lanes
    if b_pad != b:
        xt = jnp.pad(xt, ((0, 0), (0, b_pad - b)))

    grid = (b_pad // tile_b,)
    out_t = pl.pallas_call(
        qnn_kernel,
        out_shape=jax.ShapeDtypeStruct((NUM_QUBITS, b_pad), jnp.float32),
        grid=grid,
        in_specs=[
            # per-step streamed batch tile
            pl.BlockSpec((NUM_QUBITS, tile_b), lambda i: (0, i)),
            # constant index_map -> unitary stays VMEM-resident across steps
            pl.BlockSpec((STATE_DIM, STATE_DIM), lambda i: (0, 0)),
        ],
        out_specs=pl.BlockSpec((NUM_QUBITS, tile_b), lambda i: (0, i)),
        compiler_params=pltpu.CompilerParams(dimension_semantics=("parallel",)),
    )(xt, u)

    return out_t[:, :b].T                            # back to (B, Q)


# ---------------------------------------------------------------------------
# Pure-JAX reference (same math) for a correctness check.
# ---------------------------------------------------------------------------
def reference_forward(x, theta):
    ut = build_variational_unitary(theta).T
    bits = jnp.asarray(BITS)
    sign = jnp.asarray(SIGN)
    c = jnp.cos(0.5 * x)
    s = jnp.sin(0.5 * x)
    psi = jnp.ones((x.shape[0], STATE_DIM), dtype=jnp.float32)
    for q in range(NUM_QUBITS):
        bit = bits[q][None, :]
        psi = psi * (bit * s[:, q:q + 1] + (1.0 - bit) * c[:, q:q + 1])
    psi = psi @ ut
    return (psi * psi) @ sign


if __name__ == "__main__":
    key = jax.random.PRNGKey(0)
    k_theta, k_x = jax.random.split(key)
    # deterministic "uniform(0, 2*pi)" init, mirroring the module's default
    theta = jax.random.uniform(
        k_theta, (NUM_LAYERS * NUM_QUBITS,), minval=0.0, maxval=2.0 * np.pi,
        dtype=jnp.float32)

    # Main batch: multiple of TILE_B -> grid of 4 ("parallel" axis can shard
    # across v7x's two TensorCores, per-step overhead amortised).
    batch = 4 * TILE_B
    x = jax.random.uniform(
        k_x, (batch, NUM_QUBITS), minval=-np.pi, maxval=np.pi, dtype=jnp.float32)

    out = quantum_module_forward(x, theta)
    out = jax.block_until_ready(out)
    ref = reference_forward(x, theta)
    np.testing.assert_allclose(np.asarray(out), np.asarray(ref),
                               rtol=1e-4, atol=1e-4)
    assert out.shape == (batch, NUM_QUBITS) and out.dtype == jnp.float32

    # Ragged batch (not a multiple of TILE_B) -> exercises the padding path.
    x_small = x[:300]
    out_small = jax.block_until_ready(quantum_module_forward(x_small, theta))
    np.testing.assert_allclose(np.asarray(out_small),
                               np.asarray(reference_forward(x_small, theta)),
                               rtol=1e-4, atol=1e-4)
    assert out_small.shape == (300, NUM_QUBITS)

    print("KERNEL_OK")
</pallas_src>

<mosaic_0001>
module attributes {stable_mosaic.version = 11 : i64} {
  func.func @qnn_kernel(%arg0: i32, %arg1: memref<4x128xf32, #tpu.memory_space<vmem>>, %arg2: memref<16x16xf32, #tpu.memory_space<vmem>>, %arg3: memref<4x128xf32, #tpu.memory_space<vmem>>) attributes {dimension_semantics = [#tpu.dimension_semantics<parallel>], iteration_bounds = array<i64: 4>, scalar_prefetch = 0 : i64, scratch_operands = 0 : i64, tpu.core_type = #tpu.core_type<tc>, window_params = [{transform_indices = @transform_0, window_bounds = array<i64: 4, 128>}, {pipeline_mode = #tpu.pipeline_mode<synchronous>, transform_indices = @transform_1, window_bounds = array<i64: 16, 16>}, {transform_indices = @transform_2, window_bounds = array<i64: 4, 128>}]} {
    %c0 = arith.constant 0 : index
    %c0_0 = arith.constant 0 : index
    %0 = vector.load %arg1[%c0, %c0_0] : memref<4x128xf32, #tpu.memory_space<vmem>>, vector<4x128xf32>
    %cst = arith.constant 5.000000e-01 : f32
    %1 = vector.broadcast %cst : f32 to vector<4x128xf32>
    %2 = arith.mulf %1, %0 : vector<4x128xf32>
    %3 = math.cos %2 : vector<4x128xf32>
    %cst_1 = arith.constant 5.000000e-01 : f32
    %4 = vector.broadcast %cst_1 : f32 to vector<4x128xf32>
    %5 = arith.mulf %4, %0 : vector<4x128xf32>
    %6 = math.sin %5 : vector<4x128xf32>
    %7 = tpu.iota {dimensions = array<i32: 0>} : vector<16x1xi32>
    %c0_i32 = arith.constant 0 : i32
    %8 = vector.broadcast %c0_i32 : i32 to vector<16x1xi32>
    %9 = arith.shrsi %7, %8 : vector<16x1xi32>
    %c1_i32 = arith.constant 1 : i32
    %10 = vector.broadcast %c1_i32 : i32 to vector<16x1xi32>
    %11 = arith.andi %9, %10 : vector<16x1xi32>
    %c1_i32_2 = arith.constant 1 : i32
    %12 = vector.broadcast %c1_i32_2 : i32 to vector<16x1xi32>
    %13 = arith.cmpi eq, %11, %12 : vector<16x1xi32>
    %14 = vector.extract_strided_slice %6 {offsets = [0, 0], sizes = [1, 128], strides = [1, 1]} : vector<4x128xf32> to vector<1x128xf32>
    %15 = vector.extract_strided_slice %3 {offsets = [0, 0], sizes = [1, 128], strides = [1, 1]} : vector<4x128xf32> to vector<1x128xf32>
    %16 = vector.shape_cast %13 : vector<16x1xi1> to vector<16x1xi1>
    %17 = vector.broadcast %16 : vector<16x1xi1> to vector<16x128xi1>
    %18 = vector.shape_cast %14 : vector<1x128xf32> to vector<1x128xf32>
    %19 = vector.broadcast %18 : vector<1x128xf32> to vector<16x128xf32>
    %20 = vector.shape_cast %15 : vector<1x128xf32> to vector<1x128xf32>
    %21 = vector.broadcast %20 : vector<1x128xf32> to vector<16x128xf32>
    %22 = arith.select %17, %19, %21 : vector<16x128xi1>, vector<16x128xf32>
    %c1_i32_3 = arith.constant 1 : i32
    %23 = vector.broadcast %c1_i32_3 : i32 to vector<16x1xi32>
    %24 = arith.shrsi %7, %23 : vector<16x1xi32>
    %c1_i32_4 = arith.constant 1 : i32
    %25 = vector.broadcast %c1_i32_4 : i32 to vector<16x1xi32>
    %26 = arith.andi %24, %25 : vector<16x1xi32>
    %c1_i32_5 = arith.constant 1 : i32
    %27 = vector.broadcast %c1_i32_5 : i32 to vector<16x1xi32>
    %28 = arith.cmpi eq, %26, %27 : vector<16x1xi32>
    %29 = vector.extract_strided_slice %6 {offsets = [1, 0], sizes = [1, 128], strides = [1, 1]} : vector<4x128xf32> to vector<1x128xf32>
    %30 = vector.extract_strided_slice %3 {offsets = [1, 0], sizes = [1, 128], strides = [1, 1]} : vector<4x128xf32> to vector<1x128xf32>
    %31 = vector.shape_cast %28 : vector<16x1xi1> to vector<16x1xi1>
    %32 = vector.broadcast %31 : vector<16x1xi1> to vector<16x128xi1>
    %33 = vector.shape_cast %29 : vector<1x128xf32> to vector<1x128xf32>
    %34 = vector.broadcast %33 : vector<1x128xf32> to vector<16x128xf32>
    %35 = vector.shape_cast %30 : vector<1x128xf32> to vector<1x128xf32>
    %36 = vector.broadcast %35 : vector<1x128xf32> to vector<16x128xf32>
    %37 = arith.select %32, %34, %36 : vector<16x128xi1>, vector<16x128xf32>
    %38 = arith.mulf %22, %37 : vector<16x128xf32>
    %c2_i32 = arith.constant 2 : i32
    %39 = vector.broadcast %c2_i32 : i32 to vector<16x1xi32>
    %40 = arith.shrsi %7, %39 : vector<16x1xi32>
    %c1_i32_6 = arith.constant 1 : i32
    %41 = vector.broadcast %c1_i32_6 : i32 to vector<16x1xi32>
    %42 = arith.andi %40, %41 : vector<16x1xi32>
    %c1_i32_7 = arith.constant 1 : i32
    %43 = vector.broadcast %c1_i32_7 : i32 to vector<16x1xi32>
    %44 = arith.cmpi eq, %42, %43 : vector<16x1xi32>
    %45 = vector.extract_strided_slice %6 {offsets = [2, 0], sizes = [1, 128], strides = [1, 1]} : vector<4x128xf32> to vector<1x128xf32>
    %46 = vector.extract_strided_slice %3 {offsets = [2, 0], sizes = [1, 128], strides = [1, 1]} : vector<4x128xf32> to vector<1x128xf32>
    %47 = vector.shape_cast %44 : vector<16x1xi1> to vector<16x1xi1>
    %48 = vector.broadcast %47 : vector<16x1xi1> to vector<16x128xi1>
    %49 = vector.shape_cast %45 : vector<1x128xf32> to vector<1x128xf32>
    %50 = vector.broadcast %49 : vector<1x128xf32> to vector<16x128xf32>
    %51 = vector.shape_cast %46 : vector<1x128xf32> to vector<1x128xf32>
    %52 = vector.broadcast %51 : vector<1x128xf32> to vector<16x128xf32>
    %53 = arith.select %48, %50, %52 : vector<16x128xi1>, vector<16x128xf32>
    %54 = arith.mulf %38, %53 : vector<16x128xf32>
    %c3_i32 = arith.constant 3 : i32
    %55 = vector.broadcast %c3_i32 : i32 to vector<16x1xi32>
    %56 = arith.shrsi %7, %55 : vector<16x1xi32>
    %c1_i32_8 = arith.constant 1 : i32
    %57 = vector.broadcast %c1_i32_8 : i32 to vector<16x1xi32>
    %58 = arith.andi %56, %57 : vector<16x1xi32>
    %c1_i32_9 = arith.constant 1 : i32
    %59 = vector.broadcast %c1_i32_9 : i32 to vector<16x1xi32>
    %60 = arith.cmpi eq, %58, %59 : vector<16x1xi32>
    %61 = vector.extract_strided_slice %6 {offsets = [3, 0], sizes = [1, 128], strides = [1, 1]} : vector<4x128xf32> to vector<1x128xf32>
    %62 = vector.extract_strided_slice %3 {offsets = [3, 0], sizes = [1, 128], strides = [1, 1]} : vector<4x128xf32> to vector<1x128xf32>
    %63 = vector.shape_cast %60 : vector<16x1xi1> to vector<16x1xi1>
    %64 = vector.broadcast %63 : vector<16x1xi1> to vector<16x128xi1>
    %65 = vector.shape_cast %61 : vector<1x128xf32> to vector<1x128xf32>
    %66 = vector.broadcast %65 : vector<1x128xf32> to vector<16x128xf32>
    %67 = vector.shape_cast %62 : vector<1x128xf32> to vector<1x128xf32>
    %68 = vector.broadcast %67 : vector<1x128xf32> to vector<16x128xf32>
    %69 = arith.select %64, %66, %68 : vector<16x128xi1>, vector<16x128xf32>
    %70 = arith.mulf %54, %69 : vector<16x128xf32>
    %c0_10 = arith.constant 0 : index
    %c0_11 = arith.constant 0 : index
    %71 = vector.load %arg2[%c0_10, %c0_11] : memref<16x16xf32, #tpu.memory_space<vmem>>, vector<16x16xf32>
    %cst_12 = arith.constant dense<0.000000e+00> : vector<16x128xf32>
    %72 = tpu.matmul %71, %70, %cst_12 {dimension_numbers = #tpu.dot_dimension_numbers<[1], [0], [0], [1], [0, 0, 1, 1], [], []>} : vector<16x16xf32>, vector<16x128xf32>, vector<16x128xf32> -> vector<16x128xf32>
    %73 = arith.mulf %72, %72 : vector<16x128xf32>
    %c0_i32_13 = arith.constant 0 : i32
    %74 = vector.broadcast %c0_i32_13 : i32 to vector<16x1xi32>
    %75 = arith.shrsi %7, %74 : vector<16x1xi32>
    %c1_i32_14 = arith.constant 1 : i32
    %76 = vector.broadcast %c1_i32_14 : i32 to vector<16x1xi32>
    %77 = arith.andi %75, %76 : vector<16x1xi32>
    %78 = arith.sitofp %77 : vector<16x1xi32> to vector<16x1xf32>
    %cst_15 = arith.constant 2.000000e+00 : f32
    %79 = vector.broadcast %cst_15 : f32 to vector<16x1xf32>
    %80 = arith.mulf %79, %78 : vector<16x1xf32>
    %cst_16 = arith.constant 1.000000e+00 : f32
    %81 = vector.broadcast %cst_16 : f32 to vector<16x1xf32>
    %82 = arith.subf %81, %80 : vector<16x1xf32>
    %83 = vector.broadcast %82 : vector<16x1xf32> to vector<16x128xf32>
    %84 = arith.mulf %83, %73 : vector<16x128xf32>
    %cst_17 = arith.constant dense<0.000000e+00> : vector<128xf32>
    %85 = vector.multi_reduction <add>, %84, %cst_17 [0] : vector<16x128xf32> to vector<128xf32>
    %86 = vector.shape_cast %85 : vector<128xf32> to vector<1x128xf32>
    %c1_i32_18 = arith.constant 1 : i32
    %87 = vector.broadcast %c1_i32_18 : i32 to vector<16x1xi32>
    %88 = arith.shrsi %7, %87 : vector<16x1xi32>
    %c1_i32_19 = arith.constant 1 : i32
    %89 = vector.broadcast %c1_i32_19 : i32 to vector<16x1xi32>
    %90 = arith.andi %88, %89 : vector<16x1xi32>
    %91 = arith.sitofp %90 : vector<16x1xi32> to vector<16x1xf32>
    %cst_20 = arith.constant 2.000000e+00 : f32
    %92 = vector.broadcast %cst_20 : f32 to vector<16x1xf32>
    %93 = arith.mulf %92, %91 : vector<16x1xf32>
    %cst_21 = arith.constant 1.000000e+00 : f32
    %94 = vector.broadcast %cst_21 : f32 to vector<16x1xf32>
    %95 = arith.subf %94, %93 : vector<16x1xf32>
    %96 = vector.broadcast %95 : vector<16x1xf32> to vector<16x128xf32>
    %97 = arith.mulf %96, %73 : vector<16x128xf32>
    %cst_22 = arith.constant dense<0.000000e+00> : vector<128xf32>
    %98 = vector.multi_reduction <add>, %97, %cst_22 [0] : vector<16x128xf32> to vector<128xf32>
    %99 = vector.shape_cast %98 : vector<128xf32> to vector<1x128xf32>
    %c2_i32_23 = arith.constant 2 : i32
    %100 = vector.broadcast %c2_i32_23 : i32 to vector<16x1xi32>
    %101 = arith.shrsi %7, %100 : vector<16x1xi32>
    %c1_i32_24 = arith.constant 1 : i32
    %102 = vector.broadcast %c1_i32_24 : i32 to vector<16x1xi32>
    %103 = arith.andi %101, %102 : vector<16x1xi32>
    %104 = arith.sitofp %103 : vector<16x1xi32> to vector<16x1xf32>
    %cst_25 = arith.constant 2.000000e+00 : f32
    %105 = vector.broadcast %cst_25 : f32 to vector<16x1xf32>
    %106 = arith.mulf %105, %104 : vector<16x1xf32>
    %cst_26 = arith.constant 1.000000e+00 : f32
    %107 = vector.broadcast %cst_26 : f32 to vector<16x1xf32>
    %108 = arith.subf %107, %106 : vector<16x1xf32>
    %109 = vector.broadcast %108 : vector<16x1xf32> to vector<16x128xf32>
    %110 = arith.mulf %109, %73 : vector<16x128xf32>
    %cst_27 = arith.constant dense<0.000000e+00> : vector<128xf32>
    %111 = vector.multi_reduction <add>, %110, %cst_27 [0] : vector<16x128xf32> to vector<128xf32>
    %112 = vector.shape_cast %111 : vector<128xf32> to vector<1x128xf32>
    %c3_i32_28 = arith.constant 3 : i32
    %113 = vector.broadcast %c3_i32_28 : i32 to vector<16x1xi32>
    %114 = arith.shrsi %7, %113 : vector<16x1xi32>
    %c1_i32_29 = arith.constant 1 : i32
    %115 = vector.broadcast %c1_i32_29 : i32 to vector<16x1xi32>
    %116 = arith.andi %114, %115 : vector<16x1xi32>
    %117 = arith.sitofp %116 : vector<16x1xi32> to vector<16x1xf32>
    %cst_30 = arith.constant 2.000000e+00 : f32
    %118 = vector.broadcast %cst_30 : f32 to vector<16x1xf32>
    %119 = arith.mulf %118, %117 : vector<16x1xf32>
    %cst_31 = arith.constant 1.000000e+00 : f32
    %120 = vector.broadcast %cst_31 : f32 to vector<16x1xf32>
    %121 = arith.subf %120, %119 : vector<16x1xf32>
    %122 = vector.broadcast %121 : vector<16x1xf32> to vector<16x128xf32>
    %123 = arith.mulf %122, %73 : vector<16x128xf32>
    %cst_32 = arith.constant dense<0.000000e+00> : vector<128xf32>
    %124 = vector.multi_reduction <add>, %123, %cst_32 [0] : vector<16x128xf32> to vector<128xf32>
    %125 = vector.shape_cast %124 : vector<128xf32> to vector<1x128xf32>
    %126 = tpu.concatenate %86, %99, %112, %125 in 0 : vector<1x128xf32>, vector<1x128xf32>, vector<1x128xf32>, vector<1x128xf32> -> vector<4x128xf32>
    %c0_33 = arith.constant 0 : index
    %c0_34 = arith.constant 0 : index
    %127 = vector.load %arg3[%c0_33, %c0_34] : memref<4x128xf32, #tpu.memory_space<vmem>>, vector<4x128xf32>
    tpu.vector_store %arg3[%c0_33, %c0_34], %126 {strides = array<i32>} : memref<4x128xf32, #tpu.memory_space<vmem>>, vector<4x128xf32>,
    return
  }
  func.func @transform_0(%arg0: i32) -> (i32, i32) {
    %c0_i32 = arith.constant 0 : i32
    %c0_i32_0 = arith.constant 0 : i32
    return %c0_i32, %arg0 : i32, i32
  }
  func.func @transform_1(%arg0: i32) -> (i32, i32) {
    %c0_i32 = arith.constant 0 : i32
    %c0_i32_0 = arith.constant 0 : i32
    %c0_i32_1 = arith.constant 0 : i32
    return %c0_i32, %c0_i32_0 : i32, i32
  }
  func.func @transform_2(%arg0: i32) -> (i32, i32) {
    %c0_i32 = arith.constant 0 : i32
    %c0_i32_0 = arith.constant 0 : i32
    return %c0_i32, %arg0 : i32, i32
  }
}

</mosaic_0001>

<llo_original>
// kernel: tpu_custom_call.1
$region0: #{tpu_custom_call.1}
  #allocation0 [shape = 'u32[]', space=smem, size = 0x4, offset = 0x4, fixed_abs, tag = 'smem constant byte address 0x4 - core index']
  #allocation1 [shape = 'u32[144,128]{1,0:T(1,128)}', space=vmem, size = 0x12000, scoped, tag = 'internal scratch']
  %s0 = inlined_call_operand.hbm [shape: f32[4,512], index: 0, kind: input, shape index: {}]
  %s1 = inlined_call_operand.hbm [shape: f32[16,16], index: 1, kind: input, shape index: {}]
  %s2 = inlined_call_operand.hbm [shape: f32[4,512], index: 2, kind: output, shape index: {}]
  %s3 = sld [smem:[#allocation0]]
  $region49: #{tpu_custom_call.1} parent=0
    _
  %s5 = ssub.s32 1, %s3
  %s6 = scalar_select 0, %s5, %s3
  $region1: #{tpu_custom_call.1} parent=0
    #allocation2 [shape = 'u8[4096]{0}', space=vmem, size = 0x1000, scoped, tag = 'input window, operand 0']
    #allocation3 [shape = 's32[2]{0}', space=sflag, size = 0x8, scoped, tag = 'scoped memory for tpu_custom_call.1']
    #allocation4 [shape = 's32[2]{0}', space=sflag, size = 0x8, scoped, tag = 'scoped memory for tpu_custom_call.1']
    #allocation5 [shape = 'u8[8192]{0}', space=vmem, size = 0x2000, scoped, tag = 'input window, operand 1, single buffered']
    #allocation6 [shape = 's32[1]{0}', space=sflag, size = 0x4, scoped, tag = 'scoped memory for tpu_custom_call.1']
    #allocation7 [shape = 'u8[4096]{0}', space=vmem, size = 0x1000, scoped, tag = 'output window, operand 0']
    %7 = vsyncpa [#allocation3], 0
    %s8 = scalar_lea.sflag [#allocation3], 1
    %9 = vsyncpa %s8, 0
    %10 = vsyncpa [#allocation6], 0
    %11 = vsyncpa [#allocation4], 0
    %s12 = scalar_lea.sflag [#allocation4], 1
    %13 = vsyncpa %s12, 0
    loop: start=0, step=1, limit=6
    $region2: #{tpu_custom_call.1} parent=1 // loop_pre_header
      _
    $region3: #{tpu_custom_call.1} parent=1 // loop_header
      %s15 = sphi 0, %s19
      %p16 = scmp.ge.s32.totalorder %s15, 6
      %s25 = sphi 0, %s27
      %s28 = sphi 0, %s25
      %s29 = sphi 0, %s28
      %s45 = sphi 0, %s29
      %s49 = sphi 0, %s49
      %s51 = sphi 0, %s49
      %s52 = sphi 0, %s51
      %s66 = sphi 0, %s52
      %s72 = sphi 0, %s74
      %s75 = sphi 0, %s72
      %s76 = sphi 0, %s75
      %s92 = sphi 0, %s76
    $region4: #{tpu_custom_call.1} parent=1 // loop_header_branch
      %18 = sbr.rel (%p16) target = $region8
    $region5: #{tpu_custom_call.1} parent=1 // loop_body
      %s20 = ssub.s32 %s15, 1
      %s21 = ssub.s32 %s15, 2
      %s22 = sadd.s32 %s15, 1
      %s23 = ssub.s32 %s15, %s22
      %p24 = scmp.eq.s32.totalorder %s23, 0
      %s26 = sadd.s32 %s25, 1
      %s27 = scalar_select %p24, %s25, %s26
      %p30 = pneg %p24
      %p31 = scmp.eq.s32.totalorder %s15, 3
      %p32 = por %p30, %p31
      %p33 = scmp.ne.s32.totalorder %s25, %s28
      %p34 = scmp.eq.s32.totalorder %s15, 0
      %p35 = por %p33, %p34
      %p36 = scmp.ne.s32.totalorder %s25, %s28
      %p37 = scmp.eq.s32.totalorder %s20, 3
      %p38 = por %p36, %p37
      %p39 = scmp.ne.s32.totalorder %s28, %s29
      %p40 = scmp.eq.s32.totalorder %s20, 0
      %p41 = por %p39, %p40
      %p42 = scmp.ne.s32.totalorder %s28, %s29
      %p43 = scmp.eq.s32.totalorder %s21, 3
      %p44 = por %p42, %p43
      %p46 = scmp.ne.s32.totalorder %s29, %s45
      %p47 = scmp.eq.s32.totalorder %s21, 0
      %p48 = por %p46, %p47
      %s50 = sadd.s32 %s49, 1
      %p53 = scmp.eq.s32.totalorder %s15, 3
      %p54 = scmp.ne.s32.totalorder %s49, %s51
      %p55 = scmp.eq.s32.totalorder %s15, 0
      %p56 = por %p54, %p55
      %p57 = scmp.ne.s32.totalorder %s49, %s51
      %p58 = scmp.eq.s32.totalorder %s20, 3
      %p59 = por %p57, %p58
      %p60 = scmp.ne.s32.totalorder %s51, %s52
      %p61 = scmp.eq.s32.totalorder %s20, 0
      %p62 = por %p60, %p61
      %p63 = scmp.ne.s32.totalorder %s51, %s52
      %p64 = scmp.eq.s32.totalorder %s21, 3
      %p65 = por %p63, %p64
      %p67 = scmp.ne.s32.totalorder %s52, %s66
      %p68 = scmp.eq.s32.totalorder %s21, 0
      %p69 = por %p67, %p68
      %s70 = ssub.s32 %s15, %s22
      %p71 = scmp.eq.s32.totalorder %s70, 0
      %s73 = sadd.s32 %s72, 1
      %s74 = scalar_select %p71, %s72, %s73
      %p77 = pneg %p71
      %p78 = scmp.eq.s32.totalorder %s15, 3
      %p79 = por %p77, %p78
      %p80 = scmp.ne.s32.totalorder %s72, %s75
      %p81 = scmp.eq.s32.totalorder %s15, 0
      %p82 = por %p80, %p81
      %p83 = scmp.ne.s32.totalorder %s72, %s75
      %p84 = scmp.eq.s32.totalorder %s20, 3
      %p85 = por %p83, %p84
      %p86 = scmp.ne.s32.totalorder %s75, %s76
      %p87 = scmp.eq.s32.totalorder %s20, 0
      %p88 = por %p86, %p87
      %p89 = scmp.ne.s32.totalorder %s75, %s76
      %p90 = scmp.eq.s32.totalorder %s21, 3
      %p91 = por %p89, %p90
      %p93 = scmp.ne.s32.totalorder %s76, %s92
      %p94 = scmp.eq.s32.totalorder %s21, 0
      %p95 = por %p93, %p94
      %p96 = scmp.le.s32.totalorder 1, %s15
      %p97 = scmp.lt.s32.totalorder %s15, 5
      %p98 = pnand %p96, %p97
      %p99 = pneg %p98
      // Predicated region
      $region9: #{tpu_custom_call.1} parent=5 // pred_check
        _
      $region10: #{tpu_custom_call.1} parent=5 // pred_check_branch
        %101 = sbr.rel (%p98) target = $region12
      $region11: #{tpu_custom_call.1} parent=5 // pred_region
        %s102 = ssub.s32 %s15, 1
        // Predicated region
        $region13: #{tpu_custom_call.1} parent=11 // pred_check
          %p103 = pneg %p62
        $region14: #{tpu_custom_call.1} parent=11 // pred_check_branch
          %105 = sbr.rel (%p103) target = $region16
        $region15: #{tpu_custom_call.1} parent=11 // pred_region
          %s107 = ssub.s32 256, 256
          %108 = vsyncadd [#allocation6], %s107
          %s109 = sshll.u32 [#allocation5], 4
          %s110 = int_to_ptr.vmem [resolvable:$true] %s109
          %115 = dma.hbm_to_vmem [thread:$0]  %s1, 256, %s110, [#allocation6], 128, 128, 8
        $region16: #{tpu_custom_call.1} parent=11 // pred_fallthru
          _
      $region12: #{tpu_custom_call.1} parent=5 // pred_fallthru
        _
      %p116 = scmp.lt.s32.totalorder %s15, 4
      // Predicated region
      $region17: #{tpu_custom_call.1} parent=5 // pred_check
        %p117 = pneg %p116
      $region18: #{tpu_custom_call.1} parent=5 // pred_check_branch
        %119 = sbr.rel (%p117) target = $region20
      $region19: #{tpu_custom_call.1} parent=5 // pred_region
        // Predicated region
        $region21: #{tpu_custom_call.1} parent=19 // pred_check
          %p120 = pneg %p35
        $region22: #{tpu_custom_call.1} parent=19 // pred_check_branch
          %122 = sbr.rel (%p120) target = $region24
        $region23: #{tpu_custom_call.1} parent=19 // pred_region
          %s123 = sand.u32 %s25, 1
          %s124 = scalar_lea.sflag [#allocation3], %s123
          %s125 = sand.u32 %s25, 1
          %s126 = smul.addr %s125, 4
          %s127 = scalar_lea.vmem [#allocation2], %s126
          %s129 = ssub.s32 64, 64
          %130 = vsyncadd %s124, %s129
          %s131 = smul.addr %s15, 64
          %s132 = scalar_lea.hbm %s0, %s131
          %s134 = sshll.u32 %s127, 4
          %s135 = int_to_ptr.vmem [resolvable:$true] %s134
          %137 = dma.hbm_to_vmem [thread:$0]  %s132, 64, %s135, %s124
        $region24: #{tpu_custom_call.1} parent=19 // pred_fallthru
          _
      $region20: #{tpu_custom_call.1} parent=5 // pred_fallthru
        _
      %p138 = scmp.le.s32.totalorder 1, %s15
      %p139 = scmp.lt.s32.totalorder %s15, 5
      %p140 = pnand %p138, %p139
      %p141 = pneg %p140
      // Predicated region
      $region25: #{tpu_custom_call.1} parent=5 // pred_check
        _
      $region26: #{tpu_custom_call.1} parent=5 // pred_check_branch
        %143 = sbr.rel (%p140) target = $region28
      $region27: #{tpu_custom_call.1} parent=5 // pred_region
        %s144 = ssub.s32 %s15, 1
        %s145 = sand.u32 %s28, 1
        %s146 = scalar_lea.sflag [#allocation3], %s145
        %s147 = sand.u32 %s28, 1
        %s148 = smul.addr %s147, 4
        %s149 = scalar_lea.vmem [#allocation2], %s148
        // Predicated region
        $region29: #{tpu_custom_call.1} parent=27 // pred_check
          %p150 = pneg %p41
        $region30: #{tpu_custom_call.1} parent=27 // pred_check_branch
          %152 = sbr.rel (%p150) target = $region32
        $region31: #{tpu_custom_call.1} parent=27 // pred_region
          %153 = dma.done %s146, 64
        $region32: #{tpu_custom_call.1} parent=27 // pred_fallthru
          _
        // Predicated region
        $region33: #{tpu_custom_call.1} parent=27 // pred_check
          %p154 = pneg %p62
        $region34: #{tpu_custom_call.1} parent=27 // pred_check_branch
          %156 = sbr.rel (%p154) target = $region36
        $region35: #{tpu_custom_call.1} parent=27 // pred_region
          %157 = dma.done [#allocation6], 256
        $region36: #{tpu_custom_call.1} parent=27 // pred_fallthru
          _
        %s158 = sand.u32 %s28, 1
        %s159 = scalar_lea.sflag [#allocation3], %s158
        %s160 = sand.u32 %s28, 1
        %s161 = smul.addr %s160, 4
        %s162 = scalar_lea.vmem [#allocation2], %s161
        %p163 = pneg %p41
        %p164 = pneg %p38
        %p165 = pneg %p62
        %p166 = pneg %p59
        %p167 = pneg %p88
        %p168 = pneg %p85
        %s169 = sand.u32 %s75, 1
        %s170 = scalar_lea.sflag [#allocation4], %s169
        %s171 = sand.u32 %s75, 1
        %s172 = smul.addr %s171, 4
        %s173 = scalar_lea.vmem [#allocation7], %s172
        %v174 = vld [vmem:[%s149] sm:$0xf]
        %v175 = vmul.f32 %v174, 0.5
        %v176 = vand.u32 2147483647, %v175
        %vm177 = vcmp.le.f32.partialorder %v176, 0.7853982
        %vm178 = vcmp.lt.s32.totalorder %v175, 0
        %v179 = vand.u32 %v175, 2139095040
        %v180 = vshrl.u32 %v179, 23
        %v181 = vsub.s32 %v180, 127
        %v182 = vand.u32 2147483647, %v175
        %v183 = vand.u32 %v182, 8388607
        %v184 = vor.u32 %v183, 8388608
        %v185 = vsub.s32 0, %v184
        %v186 = vadd.s32 %v181, 1
        %vm187 = vcmp.gt.s32.totalorder %v186, 0
        %v188 = vsel %vm187, %v186, 0
        %v189 = vshrl.u32 %v188, 5
        %v190 = vand.u32 %v188, 31
        %v191 = vsub.s32 32, %v190
        %v192 = vshrl.u32 683565275, %v191
        %v193 = vshll.u32 683565275, %v190
        %v194 = vshrl.u32 2475754826, %v191
        %v195 = vor.u32 %v193, %v194
        %v196 = vshll.u32 2475754826, %v190
        %v197 = vshrl.u32 2131351028, %v191
        %v198 = vor.u32 %v196, %v197
        %v199 = vshll.u32 2131351028, %v190
        %v200 = vshrl.u32 2102212464, %v191
        %v201 = vor.u32 %v199, %v200
        %v202 = vshll.u32 2102212464, %v190
        %v203 = vshrl.u32 920167782, %v191
        %v204 = vor.u32 %v202, %v203
        %v205 = vshll.u32 920167782, %v190
        %v206 = vshrl.u32 1326507024, %v191
        %v207 = vor.u32 %v205, %v206
        %vm208 = vcmp.lt.s32.totalorder %v189, 1
        %vm209 = vcmp.lt.s32.totalorder %v189, 2
        %vm210 = vcmp.lt.s32.totalorder %v189, 3
        %vm211 = vcmp.lt.s32.totalorder %v189, 4
        %v212 = vsel %vm208, %v192, %v195
        %v213 = vsel %vm211, %v201, 2102212464
        %v214 = vsel %vm210, %v198, %v213
        %v215 = vsel %vm209, %v212, %v214
        %v216 = vsel %vm208, %v195, %v198
        %v217 = vsel %vm211, %v204, 920167782
        %v218 = vsel %vm210, %v201, %v217
        %v219 = vsel %vm209, %v216, %v218
        %v220 = vsel %vm208, %v198, %v201
        %v221 = vsel %vm211, %v207, 1326507024
        %v222 = vsel %vm210, %v204, %v221
        %v223 = vsel %vm209, %v220, %v222
        %v224 = vshll.u32 %v184, 8
        %v225 = vmul.u32.u64.compose %v224, %v223
        %v226 = vextract.low.u32 %v225
        %v227 = vextract.high.u32 %v225
        %v228 = vmul.u32.u64.compose %v224, %v219
        %v229 = vextract.low.u32 %v228
        %v230 = vextract.high.u32 %v228
        %v231 = vmul.u32 %v224, %v215
        %v232 = vadd.s32 %v227, %v229
        %vm233 = vc.u32 %v227, %v229
        %v234 = vadd.s32 %v230, 1
        %v235 = vsel %vm233, %v234, %v230
        %v236 = vadd.s32 %v231, %v235
        %v237 = vadd.s32 %v236, 536870912
        %v238 = vshrl.u32 %v237, 30
        %v239 = vshll.u32 %v238, 30
        %v240 = vsub.s32 %v236, %v239
        %vm241 = vcmp.lt.s32.totalorder %v240, 0
        %v242 = vsub.s32 0, %v240
        %v243 = vsel %vm241, %v242, %v240
        %v244 = vclz %v243
        %v245 = vsub.s32 %v244, 2
        %vm246 = vcmp.gt.s32.totalorder 0, %v245
        %v247 = vsel %vm246, 0, %v245
        %v248 = vsub.s32 32, %v247
        %v249 = vshll.u32 %v240, %v247
        %v250 = vshrl.u32 %v232, %v248
        %v251 = vor.u32 %v249, %v250
        %v252 = vsub.s32 4294967266, %v247
        %v253 = vadd.s32 %v252, 127
        %v254 = vshll.u32 %v253, 23
        %v255 = vor.u32 4788187, %v254
        %v256 = vand.u32 2147483647, %v255
        %v258 = vcvt.s32.f32 %v251
        %v259 = vmul.f32 %v258, %v256
        %v260 = vxor.u32 %v259, 2147483648
        %v261 = vsel %vm178, %v260, %v259
        %v262 = vsub.s32 4, %v238
        %v263 = vsel %vm178, %v262, %v238
        %v264 = vsel %vm177, %v175, %v261
        %v265 = vsel %vm177, 0, %v263
        %v266 = vcosq.f32.pop %v264
        %v267 = vsinq.f32.pop %v264
        %vm268 = vweird.f32 %v175
        %v269 = vand.u32 %v265, 3
        %vm270 = vcmp.lt.s32.totalorder %v269, 2
        %vm271 = vcmp.eq.s32.totalorder %v269, 0
        %v272 = vxor.u32 %v267, 2147483648
        %v273 = vsel %vm271, %v266, %v272
        %vm274 = vcmp.eq.s32.totalorder %v269, 2
        %v275 = vxor.u32 %v266, 2147483648
        %v276 = vsel %vm274, %v275, %v267
        %v277 = vsel %vm270, %v273, %v276
        %v278 = vsel %vm268, nan, %v277
        %v279 = vand.u32 2147483647, %v175
        %vm280 = vcmp.le.f32.partialorder %v279, 0.7853982
        %vm281 = vcmp.lt.s32.totalorder %v175, 0
        %v282 = vand.u32 %v175, 2139095040
        %v283 = vshrl.u32 %v282, 23
        %v284 = vsub.s32 %v283, 127
        %v285 = vand.u32 2147483647, %v175
        %v286 = vand.u32 %v285, 8388607
        %v287 = vor.u32 %v286, 8388608
        %v288 = vsub.s32 0, %v287
        %v289 = vadd.s32 %v284, 1
        %vm290 = vcmp.gt.s32.totalorder %v289, 0
        %v291 = vsel %vm290, %v289, 0
        %v292 = vshrl.u32 %v291, 5
        %v293 = vand.u32 %v291, 31
        %v294 = vsub.s32 32, %v293
        %v295 = vshrl.u32 683565275, %v294
        %v296 = vshll.u32 683565275, %v293
        %v297 = vshrl.u32 2475754826, %v294
        %v298 = vor.u32 %v296, %v297
        %v299 = vshll.u32 2475754826, %v293
        %v300 = vshrl.u32 2131351028, %v294
        %v301 = vor.u32 %v299, %v300
        %v302 = vshll.u32 2131351028, %v293
        %v303 = vshrl.u32 2102212464, %v294
        %v304 = vor.u32 %v302, %v303
        %v305 = vshll.u32 2102212464, %v293
        %v306 = vshrl.u32 920167782, %v294
        %v307 = vor.u32 %v305, %v306
        %v308 = vshll.u32 920167782, %v293
        %v309 = vshrl.u32 1326507024, %v294
        %v310 = vor.u32 %v308, %v309
        %vm311 = vcmp.lt.s32.totalorder %v292, 1
        %vm312 = vcmp.lt.s32.totalorder %v292, 2
        %vm313 = vcmp.lt.s32.totalorder %v292, 3
        %vm314 = vcmp.lt.s32.totalorder %v292, 4
        %v315 = vsel %vm311, %v295, %v298
        %v316 = vsel %vm314, %v304, 2102212464
        %v317 = vsel %vm313, %v301, %v316
        %v318 = vsel %vm312, %v315, %v317
        %v319 = vsel %vm311, %v298, %v301
        %v320 = vsel %vm314, %v307, 920167782
        %v321 = vsel %vm313, %v304, %v320
        %v322 = vsel %vm312, %v319, %v321
        %v323 = vsel %vm311, %v301, %v304
        %v324 = vsel %vm314, %v310, 1326507024
        %v325 = vsel %vm313, %v307, %v324
        %v326 = vsel %vm312, %v323, %v325
        %v327 = vshll.u32 %v287, 8
        %v328 = vmul.u32.u64.compose %v327, %v326
        %v329 = vextract.low.u32 %v328
        %v330 = vextract.high.u32 %v328
        %v331 = vmul.u32.u64.compose %v327, %v322
        %v332 = vextract.low.u32 %v331
        %v333 = vextract.high.u32 %v331
        %v334 = vmul.u32 %v327, %v318
        %v335 = vadd.s32 %v330, %v332
        %vm336 = vc.u32 %v330, %v332
        %v337 = vadd.s32 %v333, 1
        %v338 = vsel %vm336, %v337, %v333
        %v339 = vadd.s32 %v334, %v338
        %v340 = vadd.s32 %v339, 536870912
        %v341 = vshrl.u32 %v340, 30
        %v342 = vshll.u32 %v341, 30
        %v343 = vsub.s32 %v339, %v342
        %vm344 = vcmp.lt.s32.totalorder %v343, 0
        %v345 = vsub.s32 0, %v343
        %v346 = vsel %vm344, %v345, %v343
        %v347 = vclz %v346
        %v348 = vsub.s32 %v347, 2
        %vm349 = vcmp.gt.s32.totalorder 0, %v348
        %v350 = vsel %vm349, 0, %v348
        %v351 = vsub.s32 32, %v350
        %v352 = vshll.u32 %v343, %v350
        %v353 = vshrl.u32 %v335, %v351
        %v354 = vor.u32 %v352, %v353
        %v355 = vsub.s32 4294967266, %v350
        %v356 = vadd.s32 %v355, 127
        %v357 = vshll.u32 %v356, 23
        %v358 = vor.u32 4788187, %v357
        %v359 = vand.u32 2147483647, %v358
        %v361 = vcvt.s32.f32 %v354
        %v362 = vmul.f32 %v361, %v359
        %v363 = vxor.u32 %v362, 2147483648
        %v364 = vsel %vm281, %v363, %v362
        %v365 = vsub.s32 4, %v341
        %v366 = vsel %vm281, %v365, %v341
        %v367 = vsel %vm280, %v175, %v364
        %v368 = vsel %vm280, 0, %v366
        %v369 = vcosq.f32.pop %v367
        %v370 = vsinq.f32.pop %v367
        %vm371 = vweird.f32 %v175
        %v372 = vadd.s32 %v368, 3
        %v373 = vand.u32 %v372, 3
        %vm374 = vcmp.lt.s32.totalorder %v373, 2
        %vm375 = vcmp.eq.s32.totalorder %v373, 0
        %v376 = vxor.u32 %v370, 2147483648
        %v377 = vsel %vm375, %v369, %v376
        %vm378 = vcmp.eq.s32.totalorder %v373, 2
        %v379 = vxor.u32 %v369, 2147483648
        %v380 = vsel %vm378, %v379, %v370
        %v381 = vsel %vm374, %v377, %v380
        %v382 = vsel %vm371, nan, %v381
        %v383 = vlaneseq
        %v384 = vshrl.u32 %v383, 7
        %v385 = vadd.s32 %v384, 8
        %v386 = vand.u32 %v384, 1
        %v387 = vand.u32 %v385, 1
        %vm388 = vcmp.eq.s32.totalorder %v386, 1
        %vm389 = vcmp.eq.s32.totalorder %v387, 1
        %v390 = vsel %vm388, 1, 0
        %v391 = vsel %vm389, 1, 0
        %vm392 = vcmp.eq.s32.totalorder %v390, 1
        %vm393 = vcmp.eq.s32.totalorder %v391, 1
        %v394 = vlaneseq
        %v395 = vshrl.u32 %v394, 7
        %v396 = vsub.s32 0, %v395
        %v397 = vrot.slane %v382, %v396
        %v398 = vlaneseq
        %v399 = vshrl.u32 %v398, 7
        %v400 = vsub.s32 0, %v399
        %v401 = vrot.slane %v278, %v400
        %v402 = vsel %vm392, %v397, %v401
        %v403 = vsel %vm393, %v397, %v401
        %v404 = vshra.s32 %v384, 1
        %v405 = vshra.s32 %v385, 1
        %v406 = vand.u32 %v404, 1
        %v407 = vand.u32 %v405, 1
        %vm408 = vcmp.eq.s32.totalorder %v406, 1
        %vm409 = vcmp.eq.s32.totalorder %v407, 1
        %v410 = vsel %vm408, 1, 0
        %v411 = vsel %vm409, 1, 0
        %vm412 = vcmp.eq.s32.totalorder %v410, 1
        %vm413 = vcmp.eq.s32.totalorder %v411, 1
        %v414 = vlaneseq
        %v415 = vshrl.u32 %v414, 7
        %v416 = vsub.s32 1, %v415
        %v417 = vrot.slane %v382, %v416
        %v418 = vlaneseq
        %v419 = vshrl.u32 %v418, 7
        %v420 = vsub.s32 1, %v419
        %v421 = vrot.slane %v278, %v420
        %v422 = vsel %vm412, %v417, %v421
        %v423 = vsel %vm413, %v417, %v421
        %v424 = vmul.f32 %v402, %v422
        %v425 = vmul.f32 %v403, %v423
        %v426 = vshra.s32 %v384, 2
        %v427 = vshra.s32 %v385, 2
        %v428 = vand.u32 %v426, 1
        %v429 = vand.u32 %v427, 1
        %vm430 = vcmp.eq.s32.totalorder %v428, 1
        %vm431 = vcmp.eq.s32.totalorder %v429, 1
        %v432 = vsel %vm430, 1, 0
        %v433 = vsel %vm431, 1, 0
        %vm434 = vcmp.eq.s32.totalorder %v432, 1
        %vm435 = vcmp.eq.s32.totalorder %v433, 1
        %v436 = vlaneseq
        %v437 = vshrl.u32 %v436, 7
        %v438 = vsub.s32 2, %v437
        %v439 = vrot.slane %v382, %v438
        %v440 = vlaneseq
        %v441 = vshrl.u32 %v440, 7
        %v442 = vsub.s32 2, %v441
        %v443 = vrot.slane %v278, %v442
        %v444 = vsel %vm434, %v439, %v443
        %v445 = vsel %vm435, %v439, %v443
        %v446 = vmul.f32 %v424, %v444
        %v447 = vmul.f32 %v425, %v445
        %v448 = vshra.s32 %v384, 3
        %v449 = vshra.s32 %v385, 3
        %v450 = vand.u32 %v448, 1
        %v451 = vand.u32 %v449, 1
        %vm452 = vcmp.eq.s32.totalorder %v450, 1
        %vm453 = vcmp.eq.s32.totalorder %v451, 1
        %v454 = vsel %vm452, 1, 0
        %v455 = vsel %vm453, 1, 0
        %vm456 = vcmp.eq.s32.totalorder %v454, 1
        %vm457 = vcmp.eq.s32.totalorder %v455, 1
        %v458 = vlaneseq
        %v459 = vshrl.u32 %v458, 7
        %v460 = vsub.s32 3, %v459
        %v461 = vrot.slane %v382, %v460
        %v462 = vlaneseq
        %v463 = vshrl.u32 %v462, 7
        %v464 = vsub.s32 3, %v463
        %v465 = vrot.slane %v278, %v464
        %v466 = vsel %vm456, %v461, %v465
        %v467 = vsel %vm457, %v461, %v465
        %v468 = vmul.f32 %v446, %v466
        %v469 = vmul.f32 %v447, %v467
        %v470 = vld [vmem:[#allocation5] sm:$0xff]
        %v471 = vld [vmem:[#allocation5 + $0x8] sm:$0xff]
        %vm472 = vcmask 130048
        %v474 = vsel %vm472, %v470, 0
        %v477 = vsel %vm472, %v471, 0
        %479 = vmatprep.subr.mxu0 0.0
        %480 = vmatpush1.msra.mxu0 0.0
        %481 = vmatprep.subr.mxu0 0.0
        %482 = vmatpush1.msra.mxu0 0.0
        %483 = vmatprep.subr.mxu0 0.0
        %484 = vmatpush1.msra.mxu0 0.0
        %485 = vmatprep.subr.mxu0 0.0
        %486 = vmatpush1.msra.mxu0 0.0
        %487 = vmatprep.subr.mxu0 0.0
        %488 = vmatpush1.msra.mxu0 0.0
        %489 = vmatprep.subr.mxu0 0.0
        %490 = vmatpush1.msra.mxu0 0.0
        %491 = vmatprep.subr.mxu0 0.0
        %492 = vmatpush1.msra.mxu0 0.0
        %493 = vmatprep.subr.mxu0 0.0
        %494 = vmatpush1.msra.mxu0 0.0
        %495 = vmatprep.subr.mxu0 0.0
        %496 = vmatpush1.msra.mxu0 0.0
        %497 = vmatprep.subr.mxu0 0.0
        %498 = vmatpush1.msra.mxu0 0.0
        %499 = vmatprep.subr.mxu0 0.0
        %500 = vmatpush1.msra.mxu0 0.0
        %501 = vmatprep.subr.mxu0 0.0
        %502 = vmatpush1.msra.mxu0 0.0
        %503 = vmatprep.subr.mxu0 0.0
        %504 = vmatpush1.msra.mxu0 0.0
        %505 = vmatprep.subr.mxu0 0.0
        %506 = vmatpush1.msra.mxu0 0.0
        %507 = vmatprep.subr.mxu0 0.0
        %508 = vmatpush1.msra.mxu0 %v469
        %509 = vmatprep.subr.mxu0 0.0
        %510 = vmatpush1.msra.mxu0 %v468
        %511 = vmatprep.subr.mxu0 0.0
        %512 = vmatpush2.msra.mxu0 0.0
        %513 = vmatprep.subr.mxu0 0.0
        %514 = vmatpush2.msra.mxu0 0.0
        %515 = vmatprep.subr.mxu0 0.0
        %516 = vmatpush2.msra.mxu0 0.0
        %517 = vmatprep.subr.mxu0 0.0
        %518 = vmatpush2.msra.mxu0 0.0
        %519 = vmatprep.subr.mxu0 0.0
        %520 = vmatpush2.msra.mxu0 0.0
        %521 = vmatprep.subr.mxu0 0.0
        %522 = vmatpush2.msra.mxu0 0.0
        %523 = vmatprep.subr.mxu0 0.0
        %524 = vmatpush2.msra.mxu0 0.0
        %525 = vmatprep.subr.mxu0 0.0
        %526 = vmatpush2.msra.mxu0 0.0
        %527 = vmatprep.subr.mxu0 0.0
        %528 = vmatpush2.msra.mxu0 0.0
        %529 = vmatprep.subr.mxu0 0.0
        %530 = vmatpush2.msra.mxu0 0.0
        %531 = vmatprep.subr.mxu0 0.0
        %532 = vmatpush2.msra.mxu0 0.0
        %533 = vmatprep.subr.mxu0 0.0
        %534 = vmatpush2.msra.mxu0 0.0
        %535 = vmatprep.subr.mxu0 0.0
        %536 = vmatpush2.msra.mxu0 0.0
        %537 = vmatprep.subr.mxu0 0.0
        %538 = vmatpush2.msra.mxu0 0.0
        %539 = vmatprep.subr.mxu0 0.0
        %540 = vmatpush2.msra.mxu0 0.0
        %541 = vmatprep.subr.mxu0 0.0
        %542 = vmatpush2.msra.mxu0 0.0
        %543 = vmatprep.mubr.f32.mxu0 0.0
        %544 = vmatmul.mubr.f32.gmra.mxu0 %v474
        %v545 = vpop.f32.mrf.mxu0
        %v546 = vadd.f32 0.0, %v545
        %v547 = vpop.f32.mrf.mxu0
        %548 = vmatprep.mubr.f32.mxu0 0.0
        %549 = vmatmul.mubr.f32.gmra.mxu0 %v477
        %v550 = vpop.f32.mrf.mxu0
        %v551 = vadd.f32 0.0, %v550
        %v552 = vpop.f32.mrf.mxu0
        %553 = vdwg.mxu0
        %v554 = vmul.f32 %v546, %v546
        %v555 = vmul.f32 %v551, %v551
        %v556 = vcvt.s32.f32 %v386
        %v557 = vcvt.s32.f32 %v387
        %v558 = vmul.f32 %v556, 2.0
        %v559 = vmul.f32 %v557, 2.0
        %v560 = vsub.f32 1.0, %v558
        %v561 = vsub.f32 1.0, %v559
        %v562 = vmul.f32 %v560, %v554
        %v563 = vmul.f32 %v561, %v555
        %v564 = vadd.f32 %v562, %v563
        %v565 = vrot.slane %v564, 4
        %v566 = vadd.f32 %v564, %v565
        %v567 = vrot.slane %v566, 2
        %v568 = vadd.f32 %v566, %v567
        %v569 = vrot.slane %v568, 1
        %v570 = vadd.f32 %v568, %v569
        %v571 = vcvt.s32.f32 %v406
        %v572 = vcvt.s32.f32 %v407
        %v573 = vmul.f32 %v571, 2.0
        %v574 = vmul.f32 %v572, 2.0
        %v575 = vsub.f32 1.0, %v573
        %v576 = vsub.f32 1.0, %v574
        %v577 = vmul.f32 %v575, %v554
        %v578 = vmul.f32 %v576, %v555
        %v579 = vadd.f32 %v577, %v578
        %v580 = vrot.slane %v579, 4
        %v581 = vadd.f32 %v579, %v580
        %v582 = vrot.slane %v581, 2
        %v583 = vadd.f32 %v581, %v582
        %v584 = vrot.slane %v583, 1
        %v585 = vadd.f32 %v583, %v584
        %v586 = vcvt.s32.f32 %v428
        %v587 = vcvt.s32.f32 %v429
        %v588 = vmul.f32 %v586, 2.0
        %v589 = vmul.f32 %v587, 2.0
        %v590 = vsub.f32 1.0, %v588
        %v591 = vsub.f32 1.0, %v589
        %v592 = vmul.f32 %v590, %v554
        %v593 = vmul.f32 %v591, %v555
        %v594 = vadd.f32 %v592, %v593
        %v595 = vrot.slane %v594, 4
        %v596 = vadd.f32 %v594, %v595
        %v597 = vrot.slane %v596, 2
        %v598 = vadd.f32 %v596, %v597
        %v599 = vrot.slane %v598, 1
        %v600 = vadd.f32 %v598, %v599
        %v601 = vcvt.s32.f32 %v450
        %v602 = vcvt.s32.f32 %v451
        %v603 = vmul.f32 %v601, 2.0
        %v604 = vmul.f32 %v602, 2.0
        %v605 = vsub.f32 1.0, %v603
        %v606 = vsub.f32 1.0, %v604
        %v607 = vmul.f32 %v605, %v554
        %v608 = vmul.f32 %v606, %v555
        %v609 = vadd.f32 %v607, %v608
        %v610 = vrot.slane %v609, 4
        %v611 = vadd.f32 %v609, %v610
        %v612 = vrot.slane %v611, 2
        %v613 = vadd.f32 %v611, %v612
        %v614 = vrot.slane %v613, 1
        %v615 = vadd.f32 %v613, %v614
        %vm616 = vcmask 1040384
        %v617 = vsel %vm616, %v570, %v585
        %vm618 = vcmask 1041408
        %v619 = vsel %vm618, %v617, %v600
        %vm620 = vcmask 1042432
        %v621 = vsel %vm620, %v619, %v615
        %622 = vst [vmem:[%s173] sm:$0xf] %v621
        %s623 = sand.u32 %s75, 1
        %s624 = scalar_lea.sflag [#allocation4], %s623
        %s625 = sand.u32 %s75, 1
        %s626 = smul.addr %s625, 4
        %s627 = scalar_lea.vmem [#allocation7], %s626
        // Predicated region
        $region37: #{tpu_custom_call.1} parent=27 // pred_check
          %p628 = pneg %p85
        $region38: #{tpu_custom_call.1} parent=27 // pred_check_branch
          %630 = sbr.rel (%p628) target = $region40
        $region39: #{tpu_custom_call.1} parent=27 // pred_region
          %s632 = ssub.s32 64, 64
          %633 = vsyncadd %s624, %s632
          %s634 = smul.addr %s20, 64
          %s635 = scalar_lea.hbm %s2, %s634
          %s637 = sshll.u32 %s627, 4
          %s638 = int_to_ptr.vmem [resolvable:$true] %s637
          %640 = dma.vmem_to_hbm [thread:$0]  %s638, 64, %s635, %s624
        $region40: #{tpu_custom_call.1} parent=27 // pred_fallthru
          _
      $region28: #{tpu_custom_call.1} parent=5 // pred_fallthru
        _
      %p641 = scmp.le.s32.totalorder 2, %s15
      // Predicated region
      $region41: #{tpu_custom_call.1} parent=5 // pred_check
        %p642 = pneg %p641
      $region42: #{tpu_custom_call.1} parent=5 // pred_check_branch
        %644 = sbr.rel (%p642) target = $region44
      $region43: #{tpu_custom_call.1} parent=5 // pred_region
        %s645 = ssub.s32 %s15, 2
        // Predicated region
        $region45: #{tpu_custom_call.1} parent=43 // pred_check
          %p646 = pneg %p91
        $region46: #{tpu_custom_call.1} parent=43 // pred_check_branch
          %648 = sbr.rel (%p646) target = $region48
        $region47: #{tpu_custom_call.1} parent=43 // pred_region
          %s649 = sand.u32 %s76, 1
          %s650 = scalar_lea.sflag [#allocation4], %s649
          %s651 = sand.u32 %s76, 1
          %s652 = smul.addr %s651, 4
          %s653 = scalar_lea.vmem [#allocation7], %s652
          %654 = dma.done %s650, 64
        $region48: #{tpu_custom_call.1} parent=43 // pred_fallthru
          _
      $region44: #{tpu_custom_call.1} parent=5 // pred_fallthru
        _
    $region6: #{tpu_custom_call.1} parent=1 // loop_footer
      %s19 = sadd.s32 1, %s15
    $region7: #{tpu_custom_call.1} parent=1 // loop_footer_branch
      %14 = sbr.rel target = $region3
    $region8: #{tpu_custom_call.1} parent=1 // loop_exit
      _
    %655 = vsyncpa [#allocation3], 1
    %s656 = scalar_lea.sflag [#allocation3], 1
    %657 = vsyncpa %s656, 1
    %658 = vsyncpa [#allocation6], 1
    %659 = vsyncpa [#allocation4], 1
    %s660 = scalar_lea.sflag [#allocation4], 1
    %661 = vsyncpa %s660, 1

</llo_original>
